<compile_context>
chip_gen: v7x
topology: tpu7x:2x2x1
jax: 0.10.0
libtpu: 0.0.40
codegen_flags: <defaults>
</compile_context>

<pallas_src>
import functools

import jax
import jax.numpy as jnp
from jax.experimental import pallas as pl
from jax.experimental.pallas import tpu as pltpu


def _round_up(x, m):
    return ((x + m - 1) // m) * m


def _vmem_capacity_bytes():
    """Best-effort VMEM capacity query; falls back to the v7x-safe 64 MiB."""
    try:
        return int(pltpu.get_tpu_info().vmem_capacity_bytes)
    except Exception:
        return 64 * 1024 * 1024


def _plan_intermediate(inter, tn_target=512):
    """Return (tn, padded_I): tn divides padded_I, both multiples of 128."""
    if inter <= tn_target:
        tn = _round_up(inter, 128)
        return tn, tn
    return tn_target, _round_up(inter, tn_target)


def prepare_ffn_weights(wg_t, wu_t, wd_t, *, compute_dtype=jnp.bfloat16, tn_target=512):
    """One-time (init) weight prep: cast to the MXU operand dtype and zero-pad the
    intermediate dimension to the tile plan. Zero padding is exact: padded gate/up
    columns give silu(0)*0 = 0 and padded down-proj rows are zero. Doing this at
    init keeps the per-call path free of extra HBM passes."""
    H, I = wg_t.shape
    cdtype = jnp.dtype(compute_dtype)
    _, i_pad = _plan_intermediate(I, tn_target)
    pad = i_pad - I
    wg = wg_t.astype(cdtype)
    wu = wu_t.astype(cdtype)
    wd = wd_t.astype(cdtype)
    if pad:
        wg = jnp.pad(wg, ((0, 0), (0, pad)))
        wu = jnp.pad(wu, ((0, 0), (0, pad)))
        wd = jnp.pad(wd, ((0, pad), (0, 0)))
    return wg, wu, wd


def _pick_tile_m(M, tm_max):
    """Token-tile size: multiple of 8 (or full M), capped at tm_max, and split in
    two when a single tile would cover all of M (so v7x's second TC gets work)."""
    if M <= 8 or M % 8 != 0:
        return M                       # full-extent tile is always layout-legal
    if M > tm_max:
        return tm_max
    if M >= 512:
        return min(M, _round_up((M + 1) // 2, 256))
    return M


def _ffn_kernel(x_ref, wg_ref, wu_ref, wd_ref, o_ref, acc_ref):
    """One (token tile, intermediate chunk): partial = (silu(x@wg_j) * (x@wu_j)) @ wd_j,
    accumulated in f32 across the intermediate-chunk grid axis."""
    j = pl.program_id(1)
    cdtype = wg_ref.dtype
    # Cast the activation tile to the MXU operand dtype in VMEM (hidden under MXU).
    x = x_ref[...].astype(cdtype)                                   # (tm, H)
    g = jnp.dot(x, wg_ref[...], preferred_element_type=jnp.float32)  # (tm, tn) f32
    u = jnp.dot(x, wu_ref[...], preferred_element_type=jnp.float32)  # (tm, tn) f32
    h = (g * jax.nn.sigmoid(g)) * u                                  # SiLU * up, f32
    partial = jnp.dot(h.astype(cdtype), wd_ref[...],
                      preferred_element_type=jnp.float32)            # (tm, H) f32

    @pl.when(j == 0)
    def _():
        acc_ref[...] = partial

    @pl.when(j != 0)
    def _():
        acc_ref[...] = acc_ref[...] + partial

    @pl.when(j == pl.num_programs(1) - 1)
    def _():
        o_ref[...] = acc_ref[...].astype(o_ref.dtype)
    # TODO(synk): dropout is p=0.0 in the MiniMind config -> identity; not implemented.


@functools.partial(jax.jit, static_argnames=("tm", "tn_target"))
def feed_forward(x, wg_p, wu_p, wd_p, *, tm=None, tn_target=512):
    """SwiGLU FFN. x: (B, S, H); wg_p/wu_p: (H, I_pad); wd_p: (I_pad, H) — prepared
    by prepare_ffn_weights (cast + padded once at init). Returns (B, S, H) in x.dtype;
    MXU operand dtype = weight dtype (bf16 by default), accumulation always f32."""
    B, S, H = x.shape
    Hw, i_pad = wg_p.shape
    assert Hw == H and wd_p.shape == (i_pad, H) and wu_p.shape == (H, i_pad)
    M = B * S
    out_dtype = x.dtype
    cdtype = wg_p.dtype

    vmem_cap = _vmem_capacity_bytes()
    if tm is None:
        tm = 1024 if vmem_cap >= (100 << 20) else 512   # bigger tiles on 128 MiB parts
    tm_eff = _pick_tile_m(M, tm)
    grid_m = pl.cdiv(M, tm_eff)

    tn = min(tn_target, i_pad)
    if i_pad % tn != 0:                 # weights not prepared to this plan: fall back
        tn = i_pad
    grid_n = i_pad // tn

    x2d = x.reshape(M, H)               # contiguous reshape: no copy, no dtype cast here

    x_item = jnp.dtype(x.dtype).itemsize
    c_item = jnp.dtype(cdtype).itemsize
    o_item = jnp.dtype(out_dtype).itemsize

    cost = pl.CostEstimate(
        flops=int(4 * M * H * i_pad + 2 * M * i_pad * H),
        transcendentals=int(M * i_pad),
        bytes_accessed=int(M * H * x_item + 3 * H * i_pad * c_item + M * H * o_item),
    )

    # Footprint: double-buffered x/out tiles and weight slabs, f32 accumulator,
    # and the live (tm, tn) f32 intermediates (g, u, h) + slack.
    footprint = (2 * tm_eff * H * x_item
                 + 2 * tm_eff * H * o_item
                 + 2 * (2 * H * tn + tn * H) * c_item
                 + tm_eff * H * 4
                 + 4 * tm_eff * tn * 4)
    cap = max(min(vmem_cap - (16 << 20), 100 << 20), 16 << 20)
    vmem_limit = int(min(max(int(1.3 * footprint) + (4 << 20), 32 << 20), cap))

    out2d = pl.pallas_call(
        _ffn_kernel,
        out_shape=jax.ShapeDtypeStruct((M, H), out_dtype),
        grid_spec=pltpu.PrefetchScalarGridSpec(
            num_scalar_prefetch=0,
            grid=(grid_m, grid_n),                        # reduction axis (I chunks) last
            in_specs=[
                pl.BlockSpec((tm_eff, H), lambda i, j: (i, 0)),   # token tile (fetched once per i)
                pl.BlockSpec((H, tn), lambda i, j: (0, j)),       # gate weight chunk
                pl.BlockSpec((H, tn), lambda i, j: (0, j)),       # up weight chunk
                pl.BlockSpec((tn, H), lambda i, j: (j, 0)),       # down weight chunk
            ],
            out_specs=pl.BlockSpec((tm_eff, H), lambda i, j: (i, 0)),
            scratch_shapes=[pltpu.VMEM((tm_eff, H), jnp.float32)],
        ),
        compiler_params=pltpu.CompilerParams(
            dimension_semantics=("parallel", "arbitrary"),
            vmem_limit_bytes=vmem_limit,
        ),
        cost_estimate=cost,
    )(x2d, wg_p, wu_p, wd_p)

    return out2d.reshape(B, S, H)


def reference_ffn(x, wg_t, wu_t, wd_t):
    g = x @ wg_t
    u = x @ wu_t
    return ((g * jax.nn.sigmoid(g)) * u) @ wd_t


def reference_ffn_cast(x, wg_t, wu_t, wd_t, cdtype):
    """Reference mirroring the kernel's low-precision MXU operand casting."""
    x2 = x.astype(cdtype)
    g = jnp.dot(x2, wg_t.astype(cdtype), preferred_element_type=jnp.float32)
    u = jnp.dot(x2, wu_t.astype(cdtype), preferred_element_type=jnp.float32)
    h = (g * jax.nn.sigmoid(g)) * u
    out = jnp.dot(h.astype(cdtype), wd_t.astype(cdtype),
                  preferred_element_type=jnp.float32)
    return out.astype(x.dtype)


if __name__ == "__main__":
    # Small config consistent with the module:
    # hidden_size = 128 -> intermediate_size = 64 * ceil(128*8/3 / 64) = 384
    hidden_size = 128
    intermediate_size = 64 * ((int(hidden_size * 8 / 3) + 64 - 1) // 64)  # 384
    batch, seq = 2, 8

    key = jax.random.PRNGKey(0)
    kx, kg, ku, kd = jax.random.split(key, 4)

    x = jax.random.normal(kx, (batch, seq, hidden_size), dtype=jnp.float32)
    # nn.Linear weights are (out, in); store transposed for the kernel.
    wg_t = (jax.random.normal(kg, (intermediate_size, hidden_size), jnp.float32)
            * (hidden_size ** -0.5)).T
    wu_t = (jax.random.normal(ku, (intermediate_size, hidden_size), jnp.float32)
            * (hidden_size ** -0.5)).T
    wd_t = (jax.random.normal(kd, (hidden_size, intermediate_size), jnp.float32)
            * (intermediate_size ** -0.5)).T

    # Default path: bf16 MXU operands (f32 accumulation), weights prepared ONCE at init.
    wg_bf, wu_bf, wd_bf = prepare_ffn_weights(wg_t, wu_t, wd_t,
                                              compute_dtype=jnp.bfloat16)
    out_bf = jax.block_until_ready(feed_forward(x, wg_bf, wu_bf, wd_bf))
    ref_bf = reference_ffn_cast(x, wg_t, wu_t, wd_t, jnp.bfloat16)
    assert out_bf.shape == (batch, seq, hidden_size)
    assert out_bf.dtype == x.dtype
    assert jnp.allclose(out_bf, ref_bf, atol=3e-2, rtol=3e-2), "bf16 mismatch vs reference"

    # f32-operand path: numerics match the PyTorch module closely.
    wg_f, wu_f, wd_f = prepare_ffn_weights(wg_t, wu_t, wd_t,
                                           compute_dtype=jnp.float32)
    out_f = jax.block_until_ready(feed_forward(x, wg_f, wu_f, wd_f))
    ref_f = reference_ffn(x, wg_t, wu_t, wd_t)
    assert out_f.shape == (batch, seq, hidden_size)
    assert jnp.allclose(out_f, ref_f, atol=1e-4, rtol=1e-4), "f32 mismatch vs reference"

    print("KERNEL_OK")
</pallas_src>

<mosaic_0001>
module attributes {stable_mosaic.version = 11 : i64} {
  func.func @_ffn_kernel(%arg0: i32, %arg1: i32, %arg2: memref<16x128xf32, #tpu.memory_space<vmem>>, %arg3: memref<128x384xbf16, #tpu.memory_space<vmem>>, %arg4: memref<128x384xbf16, #tpu.memory_space<vmem>>, %arg5: memref<384x128xbf16, #tpu.memory_space<vmem>>, %arg6: memref<16x128xf32, #tpu.memory_space<vmem>>, %arg7: memref<16x128xf32, #tpu.memory_space<vmem>>) attributes {dimension_semantics = [#tpu.dimension_semantics<parallel>, #tpu.dimension_semantics<arbitrary>], iteration_bounds = array<i64: 1, 1>, scalar_prefetch = 0 : i64, scratch_operands = 1 : i64, tpu.core_type = #tpu.core_type<tc>, window_params = [{transform_indices = @transform_0, window_bounds = array<i64: 16, 128>}, {transform_indices = @transform_1, window_bounds = array<i64: 128, 384>}, {transform_indices = @transform_2, window_bounds = array<i64: 128, 384>}, {transform_indices = @transform_3, window_bounds = array<i64: 384, 128>}, {transform_indices = @transform_4, window_bounds = array<i64: 16, 128>}]} {
    %c0 = arith.constant 0 : index
    %c0_0 = arith.constant 0 : index
    %0 = vector.load %arg2[%c0, %c0_0] : memref<16x128xf32, #tpu.memory_space<vmem>>, vector<16x128xf32>
    %1 = arith.truncf %0 : vector<16x128xf32> to vector<16x128xbf16>
    %c0_1 = arith.constant 0 : index
    %c0_2 = arith.constant 0 : index
    %2 = vector.load %arg3[%c0_1, %c0_2] : memref<128x384xbf16, #tpu.memory_space<vmem>>, vector<128x384xbf16>
    %cst = arith.constant dense<0.000000e+00> : vector<16x384xf32>
    %3 = tpu.matmul %1, %2, %cst {dimension_numbers = #tpu.dot_dimension_numbers<[1], [0], [0], [1], [0, 0, 1, 1], [], []>} : vector<16x128xbf16>, vector<128x384xbf16>, vector<16x384xf32> -> vector<16x384xf32>
    %c0_3 = arith.constant 0 : index
    %c0_4 = arith.constant 0 : index
    %4 = vector.load %arg4[%c0_3, %c0_4] : memref<128x384xbf16, #tpu.memory_space<vmem>>, vector<128x384xbf16>
    %cst_5 = arith.constant dense<0.000000e+00> : vector<16x384xf32>
    %5 = tpu.matmul %1, %4, %cst_5 {dimension_numbers = #tpu.dot_dimension_numbers<[1], [0], [0], [1], [0, 0, 1, 1], [], []>} : vector<16x128xbf16>, vector<128x384xbf16>, vector<16x384xf32> -> vector<16x384xf32>
    %6 = arith.negf %3 : vector<16x384xf32>
    %7 = math.exp %6 : vector<16x384xf32>
    %cst_6 = arith.constant 1.000000e+00 : f32
    %8 = vector.broadcast %cst_6 : f32 to vector<16x384xf32>
    %9 = arith.addf %8, %7 : vector<16x384xf32>
    %10 = arith.divf %8, %9 : vector<16x384xf32>
    %11 = arith.mulf %3, %10 : vector<16x384xf32>
    %12 = arith.mulf %11, %5 : vector<16x384xf32>
    %13 = arith.truncf %12 : vector<16x384xf32> to vector<16x384xbf16>
    %c0_7 = arith.constant 0 : index
    %c0_8 = arith.constant 0 : index
    %14 = vector.load %arg5[%c0_7, %c0_8] : memref<384x128xbf16, #tpu.memory_space<vmem>>, vector<384x128xbf16>
    %cst_9 = arith.constant dense<0.000000e+00> : vector<16x128xf32>
    %15 = tpu.matmul %13, %14, %cst_9 {dimension_numbers = #tpu.dot_dimension_numbers<[1], [0], [0], [1], [0, 0, 1, 1], [], []>} : vector<16x384xbf16>, vector<384x128xbf16>, vector<16x128xf32> -> vector<16x128xf32>
    %c0_i32 = arith.constant 0 : i32
    %16 = arith.cmpi eq, %arg1, %c0_i32 : i32
    %17 = arith.extui %16 : i1 to i32
    %c0_i32_10 = arith.constant 0 : i32
    %18 = arith.cmpi ne, %17, %c0_i32_10 : i32
    scf.if %18 {
      %c0_15 = arith.constant 0 : index
      %c0_16 = arith.constant 0 : index
      %25 = vector.load %arg7[%c0_15, %c0_16] : memref<16x128xf32, #tpu.memory_space<vmem>>, vector<16x128xf32>
      tpu.vector_store %arg7[%c0_15, %c0_16], %15 {strides = array<i32>} : memref<16x128xf32, #tpu.memory_space<vmem>>, vector<16x128xf32>,
    } else {
    }
    %c0_i32_11 = arith.constant 0 : i32
    %19 = arith.cmpi ne, %arg1, %c0_i32_11 : i32
    %20 = arith.extui %19 : i1 to i32
    %c0_i32_12 = arith.constant 0 : i32
    %21 = arith.cmpi ne, %20, %c0_i32_12 : i32
    scf.if %21 {
      %c0_15 = arith.constant 0 : index
      %c0_16 = arith.constant 0 : index
      %25 = vector.load %arg7[%c0_15, %c0_16] : memref<16x128xf32, #tpu.memory_space<vmem>>, vector<16x128xf32>
      %26 = arith.addf %25, %15 : vector<16x128xf32>
      %c0_17 = arith.constant 0 : index
      %c0_18 = arith.constant 0 : index
      %27 = vector.load %arg7[%c0_17, %c0_18] : memref<16x128xf32, #tpu.memory_space<vmem>>, vector<16x128xf32>
      tpu.vector_store %arg7[%c0_17, %c0_18], %26 {strides = array<i32>} : memref<16x128xf32, #tpu.memory_space<vmem>>, vector<16x128xf32>,
    } else {
    }
    %c0_i32_13 = arith.constant 0 : i32
    %22 = arith.cmpi eq, %arg1, %c0_i32_13 : i32
    %23 = arith.extui %22 : i1 to i32
    %c0_i32_14 = arith.constant 0 : i32
    %24 = arith.cmpi ne, %23, %c0_i32_14 : i32
    scf.if %24 {
      %c0_15 = arith.constant 0 : index
      %c0_16 = arith.constant 0 : index
      %25 = vector.load %arg7[%c0_15, %c0_16] : memref<16x128xf32, #tpu.memory_space<vmem>>, vector<16x128xf32>
      %c0_17 = arith.constant 0 : index
      %c0_18 = arith.constant 0 : index
      %26 = vector.load %arg6[%c0_17, %c0_18] : memref<16x128xf32, #tpu.memory_space<vmem>>, vector<16x128xf32>
      tpu.vector_store %arg6[%c0_17, %c0_18], %25 {strides = array<i32>} : memref<16x128xf32, #tpu.memory_space<vmem>>, vector<16x128xf32>,
    } else {
    }
    return
  }
  func.func @transform_0(%arg0: i32, %arg1: i32) -> (i32, i32) {
    %c0_i32 = arith.constant 0 : i32
    %c0_i32_0 = arith.constant 0 : i32
    return %arg0, %c0_i32 : i32, i32
  }
  func.func @transform_1(%arg0: i32, %arg1: i32) -> (i32, i32) {
    %c0_i32 = arith.constant 0 : i32
    %c0_i32_0 = arith.constant 0 : i32
    return %c0_i32, %arg1 : i32, i32
  }
  func.func @transform_2(%arg0: i32, %arg1: i32) -> (i32, i32) {
    %c0_i32 = arith.constant 0 : i32
    %c0_i32_0 = arith.constant 0 : i32
    return %c0_i32, %arg1 : i32, i32
  }
  func.func @transform_3(%arg0: i32, %arg1: i32) -> (i32, i32) {
    %c0_i32 = arith.constant 0 : i32
    %c0_i32_0 = arith.constant 0 : i32
    return %arg1, %c0_i32 : i32, i32
  }
  func.func @transform_4(%arg0: i32, %arg1: i32) -> (i32, i32) {
    %c0_i32 = arith.constant 0 : i32
    %c0_i32_0 = arith.constant 0 : i32
    return %arg0, %c0_i32 : i32, i32
  }
}

</mosaic_0001>

<llo_original>
// kernel: feed_forward.1
$region0: #{feed_forward.1}
  #allocation0 [shape = 'u32[]', space=smem, size = 0x4, offset = 0x4, fixed_abs, tag = 'smem constant byte address 0x4 - core index']
  #allocation1 [shape = 'u32[144,128]{1,0:T(1,128)}', space=vmem, size = 0x12000, scoped, tag = 'internal scratch']
  #allocation2 [shape = 'f32[16,128]{1,0:T(8,128)}', space=vmem, size = 0x2000, scoped, tag = 'scratch operand']
  %s0 = inlined_call_operand.hbm [shape: f32[16,128], index: 0, kind: input, shape index: {}]
  %s1 = inlined_call_operand.hbm [shape: bf16[128,384], index: 1, kind: input, shape index: {}]
  %s2 = inlined_call_operand.hbm [shape: bf16[128,384], index: 2, kind: input, shape index: {}]
  %s3 = inlined_call_operand.hbm [shape: bf16[384,128], index: 3, kind: input, shape index: {}]
  %s4 = inlined_call_operand.hbm [shape: f32[16,128], index: 4, kind: output, shape index: {}]
  %s5 = sld [smem:[#allocation0]]
  $region54: #{feed_forward.1} parent=0
    _
  %s7 = ssub.s32 1, %s5
  %s8 = scalar_select 0, %s7, %s5
  $region1: #{feed_forward.1} parent=0
    #allocation3 [shape = 'u8[8192]{0}', space=vmem, size = 0x2000, scoped, tag = 'input window, operand 0, single buffered']
    #allocation4 [shape = 's32[1]{0}', space=sflag, size = 0x4, scoped, tag = 'scoped memory for feed_forward.1']
    #allocation5 [shape = 's32[1]{0}', space=sflag, size = 0x4, scoped, tag = 'scoped memory for feed_forward.1']
    #allocation6 [shape = 'u8[98304]{0}', space=vmem, size = 0x18000, scoped, tag = 'input window, operand 1, single buffered']
    #allocation7 [shape = 's32[1]{0}', space=sflag, size = 0x4, scoped, tag = 'scoped memory for feed_forward.1']
    #allocation8 [shape = 'u8[98304]{0}', space=vmem, size = 0x18000, scoped, tag = 'input window, operand 2, single buffered']
    #allocation9 [shape = 'u8[98304]{0}', space=vmem, size = 0x18000, scoped, tag = 'input window, operand 3, single buffered']
    #allocation10 [shape = 's32[1]{0}', space=sflag, size = 0x4, scoped, tag = 'scoped memory for feed_forward.1']
    #allocation11 [shape = 'u8[8192]{0}', space=vmem, size = 0x2000, scoped, tag = 'output window, operand 0, single buffered']
    %9 = vsyncpa [#allocation4], 0
    %10 = vsyncpa [#allocation7], 0
    %11 = vsyncpa [#allocation10], 0
    %12 = vsyncpa [#allocation5], 0
    // Predicated region
    $region2: #{feed_forward.1} parent=1 // pred_check
      _
    $region3: #{feed_forward.1} parent=1 // pred_check_branch
      %14 = sbr.rel (0) target = $region5
    $region4: #{feed_forward.1} parent=1 // pred_region
      %s16 = ssub.s32 256, 256
      %17 = vsyncadd [#allocation4], %s16
      %s18 = sshll.u32 [#allocation3], 4
      %s19 = int_to_ptr.vmem [resolvable:$true] %s18
      %24 = dma.hbm_to_vmem [thread:$0]  %s0, 256, %s19, [#allocation4], 128, 128, 8
    $region5: #{feed_forward.1} parent=1 // pred_fallthru
      _
    // Predicated region
    $region6: #{feed_forward.1} parent=1 // pred_check
      _
    $region7: #{feed_forward.1} parent=1 // pred_check_branch
      %26 = sbr.rel (0) target = $region9
    $region8: #{feed_forward.1} parent=1 // pred_region
      %s28 = ssub.s32 3072, 3072
      %29 = vsyncadd [#allocation7], %s28
      %s30 = sshll.u32 [#allocation6], 4
      %s31 = int_to_ptr.vmem [resolvable:$true] %s30
      %36 = dma.hbm_to_vmem [thread:$0]  %s1, 3072, %s31, [#allocation7], 192, 192, 12
    $region9: #{feed_forward.1} parent=1 // pred_fallthru
      _
    // Predicated region
    $region10: #{feed_forward.1} parent=1 // pred_check
      _
    $region11: #{feed_forward.1} parent=1 // pred_check_branch
      %38 = sbr.rel (0) target = $region13
    $region12: #{feed_forward.1} parent=1 // pred_region
      %s40 = ssub.s32 3072, 3072
      %41 = vsyncadd [#allocation7], %s40
      %s42 = sshll.u32 [#allocation8], 4
      %s43 = int_to_ptr.vmem [resolvable:$true] %s42
      %48 = dma.hbm_to_vmem [thread:$0]  %s2, 3072, %s43, [#allocation7], 192, 192, 12
    $region13: #{feed_forward.1} parent=1 // pred_fallthru
      _
    // Predicated region
    $region14: #{feed_forward.1} parent=1 // pred_check
      _
    $region15: #{feed_forward.1} parent=1 // pred_check_branch
      %50 = sbr.rel (0) target = $region17
    $region16: #{feed_forward.1} parent=1 // pred_region
      %s52 = ssub.s32 3072, 3072
      %53 = vsyncadd [#allocation10], %s52
      %s54 = sshll.u32 [#allocation9], 4
      %s55 = int_to_ptr.vmem [resolvable:$true] %s54
      %60 = dma.hbm_to_vmem [thread:$0]  %s3, 3072, %s55, [#allocation10], 64, 64, 4
    $region17: #{feed_forward.1} parent=1 // pred_fallthru
      _
    // Predicated region
    $region18: #{feed_forward.1} parent=1 // pred_check
      _
    $region19: #{feed_forward.1} parent=1 // pred_check_branch
      %62 = sbr.rel (0) target = $region21
    $region20: #{feed_forward.1} parent=1 // pred_region
      %63 = dma.done [#allocation4], 256
    $region21: #{feed_forward.1} parent=1 // pred_fallthru
      _
    // Predicated region
    $region22: #{feed_forward.1} parent=1 // pred_check
      _
    $region23: #{feed_forward.1} parent=1 // pred_check_branch
      %65 = sbr.rel (0) target = $region25
    $region24: #{feed_forward.1} parent=1 // pred_region
      %66 = dma.done [#allocation7], 3072
    $region25: #{feed_forward.1} parent=1 // pred_fallthru
      _
    // Predicated region
    $region26: #{feed_forward.1} parent=1 // pred_check
      _
    $region27: #{feed_forward.1} parent=1 // pred_check_branch
      %68 = sbr.rel (0) target = $region29
    $region28: #{feed_forward.1} parent=1 // pred_region
      %69 = dma.done [#allocation7], 3072
    $region29: #{feed_forward.1} parent=1 // pred_fallthru
      _
    // Predicated region
    $region30: #{feed_forward.1} parent=1 // pred_check
      _
    $region31: #{feed_forward.1} parent=1 // pred_check_branch
      %71 = sbr.rel (0) target = $region33
    $region32: #{feed_forward.1} parent=1 // pred_region
      %72 = dma.done [#allocation10], 3072
    $region33: #{feed_forward.1} parent=1 // pred_fallthru
      _
    %v74 = vld [vmem:[#allocation3] sm:$0xff]
    %v75 = vld [vmem:[#allocation3 + $0x8] sm:$0xff]
    %v76 = vpack.c.bf16 %v75, %v74
    %v77 = vld [vmem:[#allocation6] sm:$0xff]
    %v78 = vld [vmem:[#allocation6 + $0x8] sm:$0xf]
    %v79 = vld [vmem:[#allocation6 + $0xc] sm:$0xff]
    %v80 = vld [vmem:[#allocation6 + $0x14] sm:$0xf]
    %v81 = vld [vmem:[#allocation6 + $0x18] sm:$0xff]
    %v82 = vld [vmem:[#allocation6 + $0x20] sm:$0xf]
    %v83 = vld [vmem:[#allocation6 + $0x24] sm:$0xff]
    %v84 = vld [vmem:[#allocation6 + $0x2c] sm:$0xf]
    %v85 = vld [vmem:[#allocation6 + $0x30] sm:$0xff]
    %v86 = vld [vmem:[#allocation6 + $0x38] sm:$0xf]
    %v87 = vld [vmem:[#allocation6 + $0x3c] sm:$0xff]
    %v88 = vld [vmem:[#allocation6 + $0x44] sm:$0xf]
    %v89 = vld [vmem:[#allocation6 + $0x48] sm:$0xff]
    %v90 = vld [vmem:[#allocation6 + $0x50] sm:$0xf]
    %v91 = vld [vmem:[#allocation6 + $0x54] sm:$0xff]
    %v92 = vld [vmem:[#allocation6 + $0x5c] sm:$0xf]
    %v93 = vld [vmem:[#allocation6 + $0x60] sm:$0xff]
    %v94 = vld [vmem:[#allocation6 + $0x68] sm:$0xf]
    %v95 = vld [vmem:[#allocation6 + $0x6c] sm:$0xff]
    %v96 = vld [vmem:[#allocation6 + $0x74] sm:$0xf]
    %v97 = vld [vmem:[#allocation6 + $0x78] sm:$0xff]
    %v98 = vld [vmem:[#allocation6 + $0x80] sm:$0xf]
    %v99 = vld [vmem:[#allocation6 + $0x84] sm:$0xff]
    %v100 = vld [vmem:[#allocation6 + $0x8c] sm:$0xf]
    %v101 = vld [vmem:[#allocation6 + $0x90] sm:$0xff]
    %v102 = vld [vmem:[#allocation6 + $0x98] sm:$0xf]
    %v103 = vld [vmem:[#allocation6 + $0x9c] sm:$0xff]
    %v104 = vld [vmem:[#allocation6 + $0xa4] sm:$0xf]
    %v105 = vld [vmem:[#allocation6 + $0xa8] sm:$0xff]
    %v106 = vld [vmem:[#allocation6 + $0xb0] sm:$0xf]
    %v107 = vld [vmem:[#allocation6 + $0xb4] sm:$0xff]
    %v108 = vld [vmem:[#allocation6 + $0xbc] sm:$0xf]
    %v141 = vunpack.c.l.b16 %v77
    %v142 = vunpack.c.h.b16 %v77
    %v143 = vunpack.c.l.b16 %v78
    %v144 = vunpack.c.l.b16 %v79
    %v145 = vunpack.c.h.b16 %v79
    %v146 = vunpack.c.l.b16 %v80
    %v147 = vunpack.c.l.b16 %v81
    %v148 = vunpack.c.h.b16 %v81
    %v149 = vunpack.c.l.b16 %v82
    %v150 = vunpack.c.l.b16 %v83
    %v151 = vunpack.c.h.b16 %v83
    %v152 = vunpack.c.l.b16 %v84
    %v153 = vunpack.c.l.b16 %v85
    %v154 = vunpack.c.h.b16 %v85
    %v155 = vunpack.c.l.b16 %v86
    %v156 = vunpack.c.l.b16 %v87
    %v157 = vunpack.c.h.b16 %v87
    %v158 = vunpack.c.l.b16 %v88
    %v159 = vunpack.c.l.b16 %v89
    %v160 = vunpack.c.h.b16 %v89
    %v161 = vunpack.c.l.b16 %v90
    %v162 = vunpack.c.l.b16 %v91
    %v163 = vunpack.c.h.b16 %v91
    %v164 = vunpack.c.l.b16 %v92
    %v165 = vunpack.c.l.b16 %v93
    %v166 = vunpack.c.h.b16 %v93
    %v167 = vunpack.c.l.b16 %v94
    %v168 = vunpack.c.l.b16 %v95
    %v169 = vunpack.c.h.b16 %v95
    %v170 = vunpack.c.l.b16 %v96
    %v171 = vunpack.c.l.b16 %v97
    %v172 = vunpack.c.h.b16 %v97
    %v173 = vunpack.c.l.b16 %v98
    %v174 = vunpack.c.l.b16 %v99
    %v175 = vunpack.c.h.b16 %v99
    %v176 = vunpack.c.l.b16 %v100
    %v177 = vunpack.c.l.b16 %v101
    %v178 = vunpack.c.h.b16 %v101
    %v179 = vunpack.c.l.b16 %v102
    %v180 = vunpack.c.l.b16 %v103
    %v181 = vunpack.c.h.b16 %v103
    %v182 = vunpack.c.l.b16 %v104
    %v183 = vunpack.c.l.b16 %v105
    %v184 = vunpack.c.h.b16 %v105
    %v185 = vunpack.c.l.b16 %v106
    %v186 = vunpack.c.l.b16 %v107
    %v187 = vunpack.c.h.b16 %v107
    %v188 = vunpack.c.l.b16 %v108
    %v189 = vpack.c.b16 %v144, %v141
    %v190 = vpack.c.b16 %v145, %v142
    %v191 = vpack.c.b16 %v146, %v143
    %v192 = vpack.c.b16 %v150, %v147
    %v193 = vpack.c.b16 %v151, %v148
    %v194 = vpack.c.b16 %v152, %v149
    %v195 = vpack.c.b16 %v156, %v153
    %v196 = vpack.c.b16 %v157, %v154
    %v197 = vpack.c.b16 %v158, %v155
    %v198 = vpack.c.b16 %v162, %v159
    %v199 = vpack.c.b16 %v163, %v160
    %v200 = vpack.c.b16 %v164, %v161
    %v201 = vpack.c.b16 %v168, %v165
    %v202 = vpack.c.b16 %v169, %v166
    %v203 = vpack.c.b16 %v170, %v167
    %v204 = vpack.c.b16 %v174, %v171
    %v205 = vpack.c.b16 %v175, %v172
    %v206 = vpack.c.b16 %v176, %v173
    %v207 = vpack.c.b16 %v180, %v177
    %v208 = vpack.c.b16 %v181, %v178
    %v209 = vpack.c.b16 %v182, %v179
    %v210 = vpack.c.b16 %v186, %v183
    %v211 = vpack.c.b16 %v187, %v184
    %v212 = vpack.c.b16 %v188, %v185
    %237 = vmatprep.subr.bf16.mxu0 %v190
    %238 = vmatpush1.bf16.msra.mxu0 %v189
    %239 = vmatprep.subr.bf16.mxu0 %v193
    %240 = vmatpush1.bf16.msra.mxu0 %v192
    %241 = vmatprep.subr.bf16.mxu0 %v196
    %242 = vmatpush1.bf16.msra.mxu0 %v195
    %243 = vmatprep.subr.bf16.mxu0 %v199
    %244 = vmatpush1.bf16.msra.mxu0 %v198
    %245 = vmatprep.subr.bf16.mxu0 %v202
    %246 = vmatpush1.bf16.msra.mxu0 %v201
    %247 = vmatprep.subr.bf16.mxu0 %v205
    %248 = vmatpush1.bf16.msra.mxu0 %v204
    %249 = vmatprep.subr.bf16.mxu0 %v208
    %250 = vmatpush1.bf16.msra.mxu0 %v207
    %251 = vmatprep.subr.bf16.mxu0 %v211
    %252 = vmatpush1.bf16.msra.mxu0 %v210
    %253 = vmatprep.subr.bf16.mxu0 0
    %254 = vmatpush1.bf16.msra.mxu0 0
    %255 = vmatprep.subr.bf16.mxu0 0
    %256 = vmatpush1.bf16.msra.mxu0 0
    %257 = vmatprep.subr.bf16.mxu0 0
    %258 = vmatpush1.bf16.msra.mxu0 0
    %259 = vmatprep.subr.bf16.mxu0 0
    %260 = vmatpush1.bf16.msra.mxu0 0
    %261 = vmatprep.subr.bf16.mxu0 0
    %262 = vmatpush1.bf16.msra.mxu0 0
    %263 = vmatprep.subr.bf16.mxu0 0
    %264 = vmatpush1.bf16.msra.mxu0 0
    %265 = vmatprep.subr.bf16.mxu0 0
    %266 = vmatpush1.bf16.msra.mxu0 0
    %267 = vmatprep.subr.bf16.mxu0 0
    %268 = vmatpush1.bf16.msra.mxu0 0
    %269 = vmatprep.mubr.bf16.mxu0 0
    %270 = vmatmul.mubr.bf16.gmra.mrb[0].mxu0 %v76
    %v271 = vpop.f32.mrb[0].mxu0
    %v272 = vadd.f32 0.0, %v271
    %v273 = vpop.f32.mrb[0].mxu0
    %v274 = vadd.f32 0.0, %v273
    %v275 = vpop.f32.mrb[0].mxu0
    %v276 = vadd.f32 0.0, %v275
    %v277 = vpop.f32.mrb[0].mxu0
    %v278 = vadd.f32 0.0, %v277
    %279 = vdwg.mxu0
    %280 = vmatprep.subr.bf16.mxu0 0
    %281 = vmatpush1.bf16.msra.mxu0 %v191
    %282 = vmatprep.subr.bf16.mxu0 0
    %283 = vmatpush1.bf16.msra.mxu0 %v194
    %284 = vmatprep.subr.bf16.mxu0 0
    %285 = vmatpush1.bf16.msra.mxu0 %v197
    %286 = vmatprep.subr.bf16.mxu0 0
    %287 = vmatpush1.bf16.msra.mxu0 %v200
    %288 = vmatprep.subr.bf16.mxu0 0
    %289 = vmatpush1.bf16.msra.mxu0 %v203
    %290 = vmatprep.subr.bf16.mxu0 0
    %291 = vmatpush1.bf16.msra.mxu0 %v206
    %292 = vmatprep.subr.bf16.mxu0 0
    %293 = vmatpush1.bf16.msra.mxu0 %v209
    %294 = vmatprep.subr.bf16.mxu0 0
    %295 = vmatpush1.bf16.msra.mxu0 %v212
    %296 = vmatprep.subr.bf16.mxu0 0
    %297 = vmatpush1.bf16.msra.mxu0 0
    %298 = vmatprep.subr.bf16.mxu0 0
    %299 = vmatpush1.bf16.msra.mxu0 0
    %300 = vmatprep.subr.bf16.mxu0 0
    %301 = vmatpush1.bf16.msra.mxu0 0
    %302 = vmatprep.subr.bf16.mxu0 0
    %303 = vmatpush1.bf16.msra.mxu0 0
    %304 = vmatprep.subr.bf16.mxu0 0
    %305 = vmatpush1.bf16.msra.mxu0 0
    %306 = vmatprep.subr.bf16.mxu0 0
    %307 = vmatpush1.bf16.msra.mxu0 0
    %308 = vmatprep.subr.bf16.mxu0 0
    %309 = vmatpush1.bf16.msra.mxu0 0
    %310 = vmatprep.subr.bf16.mxu0 0
    %311 = vmatpush1.bf16.msra.mxu0 0
    %312 = vmatprep.mubr.bf16.mxu0 0
    %313 = vmatmul.mubr.bf16.gmra.mrb[0].mxu0 %v76
    %v314 = vpop.f32.mrb[0].mxu0
    %v315 = vadd.f32 0.0, %v314
    %v316 = vpop.f32.mrb[0].mxu0
    %v317 = vpop.f32.mrb[0].mxu0
    %v318 = vadd.f32 0.0, %v317
    %v319 = vpop.f32.mrb[0].mxu0
    %320 = vdwg.mxu0
    %v321 = vld [vmem:[#allocation8] sm:$0xff]
    %v322 = vld [vmem:[#allocation8 + $0x8] sm:$0xf]
    %v323 = vld [vmem:[#allocation8 + $0xc] sm:$0xff]
    %v324 = vld [vmem:[#allocation8 + $0x14] sm:$0xf]
    %v325 = vld [vmem:[#allocation8 + $0x18] sm:$0xff]
    %v326 = vld [vmem:[#allocation8 + $0x20] sm:$0xf]
    %v327 = vld [vmem:[#allocation8 + $0x24] sm:$0xff]
    %v328 = vld [vmem:[#allocation8 + $0x2c] sm:$0xf]
    %v329 = vld [vmem:[#allocation8 + $0x30] sm:$0xff]
    %v330 = vld [vmem:[#allocation8 + $0x38] sm:$0xf]
    %v331 = vld [vmem:[#allocation8 + $0x3c] sm:$0xff]
    %v332 = vld [vmem:[#allocation8 + $0x44] sm:$0xf]
    %v333 = vld [vmem:[#allocation8 + $0x48] sm:$0xff]
    %v334 = vld [vmem:[#allocation8 + $0x50] sm:$0xf]
    %v335 = vld [vmem:[#allocation8 + $0x54] sm:$0xff]
    %v336 = vld [vmem:[#allocation8 + $0x5c] sm:$0xf]
    %v337 = vld [vmem:[#allocation8 + $0x60] sm:$0xff]
    %v338 = vld [vmem:[#allocation8 + $0x68] sm:$0xf]
    %v339 = vld [vmem:[#allocation8 + $0x6c] sm:$0xff]
    %v340 = vld [vmem:[#allocation8 + $0x74] sm:$0xf]
    %v341 = vld [vmem:[#allocation8 + $0x78] sm:$0xff]
    %v342 = vld [vmem:[#allocation8 + $0x80] sm:$0xf]
    %v343 = vld [vmem:[#allocation8 + $0x84] sm:$0xff]
    %v344 = vld [vmem:[#allocation8 + $0x8c] sm:$0xf]
    %v345 = vld [vmem:[#allocation8 + $0x90] sm:$0xff]
    %v346 = vld [vmem:[#allocation8 + $0x98] sm:$0xf]
    %v347 = vld [vmem:[#allocation8 + $0x9c] sm:$0xff]
    %v348 = vld [vmem:[#allocation8 + $0xa4] sm:$0xf]
    %v349 = vld [vmem:[#allocation8 + $0xa8] sm:$0xff]
    %v350 = vld [vmem:[#allocation8 + $0xb0] sm:$0xf]
    %v351 = vld [vmem:[#allocation8 + $0xb4] sm:$0xff]
    %v352 = vld [vmem:[#allocation8 + $0xbc] sm:$0xf]
    %v385 = vunpack.c.l.b16 %v321
    %v386 = vunpack.c.h.b16 %v321
    %v387 = vunpack.c.l.b16 %v322
    %v388 = vunpack.c.l.b16 %v323
    %v389 = vunpack.c.h.b16 %v323
    %v390 = vunpack.c.l.b16 %v324
    %v391 = vunpack.c.l.b16 %v325
    %v392 = vunpack.c.h.b16 %v325
    %v393 = vunpack.c.l.b16 %v326
    %v394 = vunpack.c.l.b16 %v327
    %v395 = vunpack.c.h.b16 %v327
    %v396 = vunpack.c.l.b16 %v328
    %v397 = vunpack.c.l.b16 %v329
    %v398 = vunpack.c.h.b16 %v329
    %v399 = vunpack.c.l.b16 %v330
    %v400 = vunpack.c.l.b16 %v331
    %v401 = vunpack.c.h.b16 %v331
    %v402 = vunpack.c.l.b16 %v332
    %v403 = vunpack.c.l.b16 %v333
    %v404 = vunpack.c.h.b16 %v333
    %v405 = vunpack.c.l.b16 %v334
    %v406 = vunpack.c.l.b16 %v335
    %v407 = vunpack.c.h.b16 %v335
    %v408 = vunpack.c.l.b16 %v336
    %v409 = vunpack.c.l.b16 %v337
    %v410 = vunpack.c.h.b16 %v337
    %v411 = vunpack.c.l.b16 %v338
    %v412 = vunpack.c.l.b16 %v339
    %v413 = vunpack.c.h.b16 %v339
    %v414 = vunpack.c.l.b16 %v340
    %v415 = vunpack.c.l.b16 %v341
    %v416 = vunpack.c.h.b16 %v341
    %v417 = vunpack.c.l.b16 %v342
    %v418 = vunpack.c.l.b16 %v343
    %v419 = vunpack.c.h.b16 %v343
    %v420 = vunpack.c.l.b16 %v344
    %v421 = vunpack.c.l.b16 %v345
    %v422 = vunpack.c.h.b16 %v345
    %v423 = vunpack.c.l.b16 %v346
    %v424 = vunpack.c.l.b16 %v347
    %v425 = vunpack.c.h.b16 %v347
    %v426 = vunpack.c.l.b16 %v348
    %v427 = vunpack.c.l.b16 %v349
    %v428 = vunpack.c.h.b16 %v349
    %v429 = vunpack.c.l.b16 %v350
    %v430 = vunpack.c.l.b16 %v351
    %v431 = vunpack.c.h.b16 %v351
    %v432 = vunpack.c.l.b16 %v352
    %v433 = vpack.c.b16 %v388, %v385
    %v434 = vpack.c.b16 %v389, %v386
    %v435 = vpack.c.b16 %v390, %v387
    %v436 = vpack.c.b16 %v394, %v391
    %v437 = vpack.c.b16 %v395, %v392
    %v438 = vpack.c.b16 %v396, %v393
    %v439 = vpack.c.b16 %v400, %v397
    %v440 = vpack.c.b16 %v401, %v398
    %v441 = vpack.c.b16 %v402, %v399
    %v442 = vpack.c.b16 %v406, %v403
    %v443 = vpack.c.b16 %v407, %v404
    %v444 = vpack.c.b16 %v408, %v405
    %v445 = vpack.c.b16 %v412, %v409
    %v446 = vpack.c.b16 %v413, %v410
    %v447 = vpack.c.b16 %v414, %v411
    %v448 = vpack.c.b16 %v418, %v415
    %v449 = vpack.c.b16 %v419, %v416
    %v450 = vpack.c.b16 %v420, %v417
    %v451 = vpack.c.b16 %v424, %v421
    %v452 = vpack.c.b16 %v425, %v422
    %v453 = vpack.c.b16 %v426, %v423
    %v454 = vpack.c.b16 %v430, %v427
    %v455 = vpack.c.b16 %v431, %v428
    %v456 = vpack.c.b16 %v432, %v429
    %481 = vmatprep.subr.bf16.mxu0 %v434
    %482 = vmatpush1.bf16.msra.mxu0 %v433
    %483 = vmatprep.subr.bf16.mxu0 %v437
    %484 = vmatpush1.bf16.msra.mxu0 %v436
    %485 = vmatprep.subr.bf16.mxu0 %v440
    %486 = vmatpush1.bf16.msra.mxu0 %v439
    %487 = vmatprep.subr.bf16.mxu0 %v443
    %488 = vmatpush1.bf16.msra.mxu0 %v442
    %489 = vmatprep.subr.bf16.mxu0 %v446
    %490 = vmatpush1.bf16.msra.mxu0 %v445
    %491 = vmatprep.subr.bf16.mxu0 %v449
    %492 = vmatpush1.bf16.msra.mxu0 %v448
    %493 = vmatprep.subr.bf16.mxu0 %v452
    %494 = vmatpush1.bf16.msra.mxu0 %v451
    %495 = vmatprep.subr.bf16.mxu0 %v455
    %496 = vmatpush1.bf16.msra.mxu0 %v454
    %497 = vmatprep.subr.bf16.mxu0 0
    %498 = vmatpush1.bf16.msra.mxu0 0
    %499 = vmatprep.subr.bf16.mxu0 0
    %500 = vmatpush1.bf16.msra.mxu0 0
    %501 = vmatprep.subr.bf16.mxu0 0
    %502 = vmatpush1.bf16.msra.mxu0 0
    %503 = vmatprep.subr.bf16.mxu0 0
    %504 = vmatpush1.bf16.msra.mxu0 0
    %505 = vmatprep.subr.bf16.mxu0 0
    %506 = vmatpush1.bf16.msra.mxu0 0
    %507 = vmatprep.subr.bf16.mxu0 0
    %508 = vmatpush1.bf16.msra.mxu0 0
    %509 = vmatprep.subr.bf16.mxu0 0
    %510 = vmatpush1.bf16.msra.mxu0 0
    %511 = vmatprep.subr.bf16.mxu0 0
    %512 = vmatpush1.bf16.msra.mxu0 0
    %513 = vmatprep.mubr.bf16.mxu0 0
    %514 = vmatmul.mubr.bf16.gmra.mrb[0].mxu0 %v76
    %v515 = vpop.f32.mrb[0].mxu0
    %v516 = vadd.f32 0.0, %v515
    %v517 = vpop.f32.mrb[0].mxu0
    %v518 = vadd.f32 0.0, %v517
    %v519 = vpop.f32.mrb[0].mxu0
    %v520 = vadd.f32 0.0, %v519
    %v521 = vpop.f32.mrb[0].mxu0
    %v522 = vadd.f32 0.0, %v521
    %523 = vdwg.mxu0
    %524 = vmatprep.subr.bf16.mxu0 0
    %525 = vmatpush1.bf16.msra.mxu0 %v435
    %526 = vmatprep.subr.bf16.mxu0 0
    %527 = vmatpush1.bf16.msra.mxu0 %v438
    %528 = vmatprep.subr.bf16.mxu0 0
    %529 = vmatpush1.bf16.msra.mxu0 %v441
    %530 = vmatprep.subr.bf16.mxu0 0
    %531 = vmatpush1.bf16.msra.mxu0 %v444
    %532 = vmatprep.subr.bf16.mxu0 0
    %533 = vmatpush1.bf16.msra.mxu0 %v447
    %534 = vmatprep.subr.bf16.mxu0 0
    %535 = vmatpush1.bf16.msra.mxu0 %v450
    %536 = vmatprep.subr.bf16.mxu0 0
    %537 = vmatpush1.bf16.msra.mxu0 %v453
    %538 = vmatprep.subr.bf16.mxu0 0
    %539 = vmatpush1.bf16.msra.mxu0 %v456
    %540 = vmatprep.subr.bf16.mxu0 0
    %541 = vmatpush1.bf16.msra.mxu0 0
    %542 = vmatprep.subr.bf16.mxu0 0
    %543 = vmatpush1.bf16.msra.mxu0 0
    %544 = vmatprep.subr.bf16.mxu0 0
    %545 = vmatpush1.bf16.msra.mxu0 0
    %546 = vmatprep.subr.bf16.mxu0 0
    %547 = vmatpush1.bf16.msra.mxu0 0
    %548 = vmatprep.subr.bf16.mxu0 0
    %549 = vmatpush1.bf16.msra.mxu0 0
    %550 = vmatprep.subr.bf16.mxu0 0
    %551 = vmatpush1.bf16.msra.mxu0 0
    %552 = vmatprep.subr.bf16.mxu0 0
    %553 = vmatpush1.bf16.msra.mxu0 0
    %554 = vmatprep.subr.bf16.mxu0 0
    %555 = vmatpush1.bf16.msra.mxu0 0
    %556 = vmatprep.mubr.bf16.mxu0 0
    %557 = vmatmul.mubr.bf16.gmra.mrb[0].mxu0 %v76
    %v558 = vpop.f32.mrb[0].mxu0
    %v559 = vadd.f32 0.0, %v558
    %v560 = vpop.f32.mrb[0].mxu0
    %v561 = vpop.f32.mrb[0].mxu0
    %v562 = vadd.f32 0.0, %v561
    %v563 = vpop.f32.mrb[0].mxu0
    %564 = vdwg.mxu0
    %v565 = vxor.u32 %v272, 2147483648
    %v566 = vxor.u32 %v274, 2147483648
    %v567 = vxor.u32 %v315, 2147483648
    %v568 = vxor.u32 %v276, 2147483648
    %v569 = vxor.u32 %v278, 2147483648
    %v570 = vxor.u32 %v318, 2147483648
    %v571 = vmul.f32 %v565, 1.442695
    %v572 = vpow.pop %v571
    %v573 = vmul.f32 %v566, 1.442695
    %v574 = vpow.pop %v573
    %v575 = vmul.f32 %v567, 1.442695
    %v576 = vpow.pop %v575
    %v577 = vmul.f32 %v568, 1.442695
    %v578 = vpow.pop %v577
    %v579 = vmul.f32 %v569, 1.442695
    %v580 = vpow.pop %v579
    %v581 = vmul.f32 %v570, 1.442695
    %v582 = vpow.pop %v581
    %v583 = vadd.f32 %v572, 1.0
    %v584 = vadd.f32 %v574, 1.0
    %v585 = vadd.f32 %v576, 1.0
    %v586 = vadd.f32 %v578, 1.0
    %v587 = vadd.f32 %v580, 1.0
    %v588 = vadd.f32 %v582, 1.0
    %v589 = vrcp.pop %v583
    %v590 = vmul.f32 1.0, %v589
    %v591 = vrcp.pop %v584
    %v592 = vmul.f32 1.0, %v591
    %v593 = vrcp.pop %v585
    %v594 = vmul.f32 1.0, %v593
    %v595 = vrcp.pop %v586
    %v596 = vmul.f32 1.0, %v595
    %v597 = vrcp.pop %v587
    %v598 = vmul.f32 1.0, %v597
    %v599 = vrcp.pop %v588
    %v600 = vmul.f32 1.0, %v599
    %v601 = vmul.f32 %v272, %v590
    %v602 = vmul.f32 %v274, %v592
    %v603 = vmul.f32 %v315, %v594
    %v604 = vmul.f32 %v276, %v596
    %v605 = vmul.f32 %v278, %v598
    %v606 = vmul.f32 %v318, %v600
    %v607 = vmul.f32 %v601, %v516
    %v608 = vmul.f32 %v602, %v518
    %v609 = vmul.f32 %v603, %v559
    %v610 = vmul.f32 %v604, %v520
    %v611 = vmul.f32 %v605, %v522
    %v612 = vmul.f32 %v606, %v562
    %v613 = vpack.c.bf16 %v610, %v607
    %v614 = vpack.c.bf16 %v611, %v608
    %v615 = vpack.c.bf16 %v612, %v609
    %v616 = vld [vmem:[#allocation9] sm:$0xf]
    %v617 = vld [vmem:[#allocation9 + $0x4] sm:$0xf]
    %v618 = vld [vmem:[#allocation9 + $0x8] sm:$0xf]
    %v619 = vld [vmem:[#allocation9 + $0xc] sm:$0xf]
    %v620 = vld [vmem:[#allocation9 + $0x10] sm:$0xf]
    %v621 = vld [vmem:[#allocation9 + $0x14] sm:$0xf]
    %v622 = vld [vmem:[#allocation9 + $0x18] sm:$0xf]
    %v623 = vld [vmem:[#allocation9 + $0x1c] sm:$0xf]
    %v624 = vld [vmem:[#allocation9 + $0x20] sm:$0xf]
    %v625 = vld [vmem:[#allocation9 + $0x24] sm:$0xf]
    %v626 = vld [vmem:[#allocation9 + $0x28] sm:$0xf]
    %v627 = vld [vmem:[#allocation9 + $0x2c] sm:$0xf]
    %v628 = vld [vmem:[#allocation9 + $0x30] sm:$0xf]
    %v629 = vld [vmem:[#allocation9 + $0x34] sm:$0xf]
    %v630 = vld [vmem:[#allocation9 + $0x38] sm:$0xf]
    %v631 = vld [vmem:[#allocation9 + $0x3c] sm:$0xf]
    %v632 = vld [vmem:[#allocation9 + $0x40] sm:$0xf]
    %v633 = vld [vmem:[#allocation9 + $0x44] sm:$0xf]
    %v634 = vld [vmem:[#allocation9 + $0x48] sm:$0xf]
    %v635 = vld [vmem:[#allocation9 + $0x4c] sm:$0xf]
    %v636 = vld [vmem:[#allocation9 + $0x50] sm:$0xf]
    %v637 = vld [vmem:[#allocation9 + $0x54] sm:$0xf]
    %v638 = vld [vmem:[#allocation9 + $0x58] sm:$0xf]
    %v639 = vld [vmem:[#allocation9 + $0x5c] sm:$0xf]
    %v640 = vld [vmem:[#allocation9 + $0x60] sm:$0xf]
    %v641 = vld [vmem:[#allocation9 + $0x64] sm:$0xf]
    %v642 = vld [vmem:[#allocation9 + $0x68] sm:$0xf]
    %v643 = vld [vmem:[#allocation9 + $0x6c] sm:$0xf]
    %v644 = vld [vmem:[#allocation9 + $0x70] sm:$0xf]
    %v645 = vld [vmem:[#allocation9 + $0x74] sm:$0xf]
    %v646 = vld [vmem:[#allocation9 + $0x78] sm:$0xf]
    %v647 = vld [vmem:[#allocation9 + $0x7c] sm:$0xf]
    %v648 = vld [vmem:[#allocation9 + $0x80] sm:$0xf]
    %v649 = vld [vmem:[#allocation9 + $0x84] sm:$0xf]
    %v650 = vld [vmem:[#allocation9 + $0x88] sm:$0xf]
    %v651 = vld [vmem:[#allocation9 + $0x8c] sm:$0xf]
    %v652 = vld [vmem:[#allocation9 + $0x90] sm:$0xf]
    %v653 = vld [vmem:[#allocation9 + $0x94] sm:$0xf]
    %v654 = vld [vmem:[#allocation9 + $0x98] sm:$0xf]
    %v655 = vld [vmem:[#allocation9 + $0x9c] sm:$0xf]
    %v656 = vld [vmem:[#allocation9 + $0xa0] sm:$0xf]
    %v657 = vld [vmem:[#allocation9 + $0xa4] sm:$0xf]
    %v658 = vld [vmem:[#allocation9 + $0xa8] sm:$0xf]
    %v659 = vld [vmem:[#allocation9 + $0xac] sm:$0xf]
    %v660 = vld [vmem:[#allocation9 + $0xb0] sm:$0xf]
    %v661 = vld [vmem:[#allocation9 + $0xb4] sm:$0xf]
    %v662 = vld [vmem:[#allocation9 + $0xb8] sm:$0xf]
    %v663 = vld [vmem:[#allocation9 + $0xbc] sm:$0xf]
    %v712 = vunpack.c.l.b16 %v616
    %v713 = vunpack.c.l.b16 %v617
    %v714 = vunpack.c.l.b16 %v618
    %v715 = vunpack.c.l.b16 %v619
    %v716 = vunpack.c.l.b16 %v620
    %v717 = vunpack.c.l.b16 %v621
    %v718 = vunpack.c.l.b16 %v622
    %v719 = vunpack.c.l.b16 %v623
    %v720 = vunpack.c.l.b16 %v624
    %v721 = vunpack.c.l.b16 %v625
    %v722 = vunpack.c.l.b16 %v626
    %v723 = vunpack.c.l.b16 %v627
    %v724 = vunpack.c.l.b16 %v628
    %v725 = vunpack.c.l.b16 %v629
    %v726 = vunpack.c.l.b16 %v630
    %v727 = vunpack.c.l.b16 %v631
    %v728 = vunpack.c.l.b16 %v632
    %v729 = vunpack.c.l.b16 %v633
    %v730 = vunpack.c.l.b16 %v634
    %v731 = vunpack.c.l.b16 %v635
    %v732 = vunpack.c.l.b16 %v636
    %v733 = vunpack.c.l.b16 %v637
    %v734 = vunpack.c.l.b16 %v638
    %v735 = vunpack.c.l.b16 %v639
    %v736 = vunpack.c.l.b16 %v640
    %v737 = vunpack.c.l.b16 %v641
    %v738 = vunpack.c.l.b16 %v642
    %v739 = vunpack.c.l.b16 %v643
    %v740 = vunpack.c.l.b16 %v644
    %v741 = vunpack.c.l.b16 %v645
    %v742 = vunpack.c.l.b16 %v646
    %v743 = vunpack.c.l.b16 %v647
    %v744 = vunpack.c.l.b16 %v648
    %v745 = vunpack.c.l.b16 %v649
    %v746 = vunpack.c.l.b16 %v650
    %v747 = vunpack.c.l.b16 %v651
    %v748 = vunpack.c.l.b16 %v652
    %v749 = vunpack.c.l.b16 %v653
    %v750 = vunpack.c.l.b16 %v654
    %v751 = vunpack.c.l.b16 %v655
    %v752 = vunpack.c.l.b16 %v656
    %v753 = vunpack.c.l.b16 %v657
    %v754 = vunpack.c.l.b16 %v658
    %v755 = vunpack.c.l.b16 %v659
    %v756 = vunpack.c.l.b16 %v660
    %v757 = vunpack.c.l.b16 %v661
    %v758 = vunpack.c.l.b16 %v662
    %v759 = vunpack.c.l.b16 %v663
    %v760 = vpack.c.b16 %v713, %v712
    %v761 = vpack.c.b16 %v715, %v714
    %v762 = vpack.c.b16 %v717, %v716
    %v763 = vpack.c.b16 %v719, %v718
    %v764 = vpack.c.b16 %v721, %v720
    %v765 = vpack.c.b16 %v723, %v722
    %v766 = vpack.c.b16 %v725, %v724
    %v767 = vpack.c.b16 %v727, %v726
    %v768 = vpack.c.b16 %v729, %v728
    %v769 = vpack.c.b16 %v731, %v730
    %v770 = vpack.c.b16 %v733, %v732
    %v771 = vpack.c.b16 %v735, %v734
    %v772 = vpack.c.b16 %v737, %v736
    %v773 = vpack.c.b16 %v739, %v738
    %v774 = vpack.c.b16 %v741, %v740
    %v775 = vpack.c.b16 %v743, %v742
    %v776 = vpack.c.b16 %v745, %v744
    %v777 = vpack.c.b16 %v747, %v746
    %v778 = vpack.c.b16 %v749, %v748
    %v779 = vpack.c.b16 %v751, %v750
    %v780 = vpack.c.b16 %v753, %v752
    %v781 = vpack.c.b16 %v755, %v754
    %v782 = vpack.c.b16 %v757, %v756
    %v783 = vpack.c.b16 %v759, %v758
    %808 = vmatprep.subr.bf16.mxu0 0
    %809 = vmatpush1.bf16.msra.mxu0 %v760
    %810 = vmatprep.subr.bf16.mxu0 0
    %811 = vmatpush1.bf16.msra.mxu0 %v761
    %812 = vmatprep.subr.bf16.mxu0 0
    %813 = vmatpush1.bf16.msra.mxu0 %v762
    %814 = vmatprep.subr.bf16.mxu0 0
    %815 = vmatpush1.bf16.msra.mxu0 %v763
    %816 = vmatprep.subr.bf16.mxu0 0
    %817 = vmatpush1.bf16.msra.mxu0 %v764
    %818 = vmatprep.subr.bf16.mxu0 0
    %819 = vmatpush1.bf16.msra.mxu0 %v765
    %820 = vmatprep.subr.bf16.mxu0 0
    %821 = vmatpush1.bf16.msra.mxu0 %v766
    %822 = vmatprep.subr.bf16.mxu0 0
    %823 = vmatpush1.bf16.msra.mxu0 %v767
    %824 = vmatprep.subr.bf16.mxu0 0
    %825 = vmatpush1.bf16.msra.mxu0 %v768
    %826 = vmatprep.subr.bf16.mxu0 0
    %827 = vmatpush1.bf16.msra.mxu0 %v769
    %828 = vmatprep.subr.bf16.mxu0 0
    %829 = vmatpush1.bf16.msra.mxu0 %v770
    %830 = vmatprep.subr.bf16.mxu0 0
    %831 = vmatpush1.bf16.msra.mxu0 %v771
    %832 = vmatprep.subr.bf16.mxu0 0
    %833 = vmatpush1.bf16.msra.mxu0 %v772
    %834 = vmatprep.subr.bf16.mxu0 0
    %835 = vmatpush1.bf16.msra.mxu0 %v773
    %836 = vmatprep.subr.bf16.mxu0 0
    %837 = vmatpush1.bf16.msra.mxu0 %v774
    %838 = vmatprep.subr.bf16.mxu0 0
    %839 = vmatpush1.bf16.msra.mxu0 %v775
    %840 = vmatprep.mubr.bf16.mxu0 %v614
    %841 = vmatmul.mubr.bf16.gmra.mrb[0].mxu0 %v613
    %v842 = vpop.f32.mrb[0].mxu0
    %v843 = vadd.f32 0.0, %v842
    %v844 = vpop.f32.mrb[0].mxu0
    %v845 = vpop.f32.mrb[0].mxu0
    %v846 = vadd.f32 0.0, %v845
    %v847 = vpop.f32.mrb[0].mxu0
    %848 = vdwg.mxu0
    %849 = vmatprep.subr.bf16.mxu0 0
    %850 = vmatpush1.bf16.msra.mxu0 %v776
    %851 = vmatprep.subr.bf16.mxu0 0
    %852 = vmatpush1.bf16.msra.mxu0 %v777
    %853 = vmatprep.subr.bf16.mxu0 0
    %854 = vmatpush1.bf16.msra.mxu0 %v778
    %855 = vmatprep.subr.bf16.mxu0 0
    %856 = vmatpush1.bf16.msra.mxu0 %v779
    %857 = vmatprep.subr.bf16.mxu0 0
    %858 = vmatpush1.bf16.msra.mxu0 %v780
    %859 = vmatprep.subr.bf16.mxu0 0
    %860 = vmatpush1.bf16.msra.mxu0 %v781
    %861 = vmatprep.subr.bf16.mxu0 0
    %862 = vmatpush1.bf16.msra.mxu0 %v782
    %863 = vmatprep.subr.bf16.mxu0 0
    %864 = vmatpush1.bf16.msra.mxu0 %v783
    %865 = vmatprep.subr.bf16.mxu0 0
    %866 = vmatpush1.bf16.msra.mxu0 0
    %867 = vmatprep.subr.bf16.mxu0 0
    %868 = vmatpush1.bf16.msra.mxu0 0
    %869 = vmatprep.subr.bf16.mxu0 0
    %870 = vmatpush1.bf16.msra.mxu0 0
    %871 = vmatprep.subr.bf16.mxu0 0
    %872 = vmatpush1.bf16.msra.mxu0 0
    %873 = vmatprep.subr.bf16.mxu0 0
    %874 = vmatpush1.bf16.msra.mxu0 0
    %875 = vmatprep.subr.bf16.mxu0 0
    %876 = vmatpush1.bf16.msra.mxu0 0
    %877 = vmatprep.subr.bf16.mxu0 0
    %878 = vmatpush1.bf16.msra.mxu0 0
    %879 = vmatprep.subr.bf16.mxu0 0
    %880 = vmatpush1.bf16.msra.mxu0 0
    %881 = vmatprep.mubr.bf16.mxu0 0
    %882 = vmatmul.mubr.bf16.gmra.mrb[0].mxu0 %v615
    %v883 = vpop.f32.mrb[0].mxu0
    %v884 = vadd.f32 %v843, %v883
    %v885 = vpop.f32.mrb[0].mxu0
    %v886 = vpop.f32.mrb[0].mxu0
    %v887 = vadd.f32 %v846, %v886
    %v888 = vpop.f32.mrb[0].mxu0
    %889 = vdwg.mxu0
    %p890 = scmp.eq.s32.totalorder 0, 0
    // Predicated region
    $region34: #{feed_forward.1} parent=1 // pred_check
      %p891 = pneg %p890
    $region35: #{feed_forward.1} parent=1 // pred_check_branch
      %893 = sbr.rel (%p891) target = $region37
    $region36: #{feed_forward.1} parent=1 // pred_region
      %894 = vst [vmem:[#allocation2] sm:$0xff] %v884
      %895 = vst [vmem:[#allocation2 + $0x8] sm:$0xff] %v887
    $region37: #{feed_forward.1} parent=1 // pred_fallthru
      _
    %p896 = scmp.ne.s32.totalorder 0, 0
    // Predicated region
    $region38: #{feed_forward.1} parent=1 // pred_check
      %p897 = pneg %p896
    $region39: #{feed_forward.1} parent=1 // pred_check_branch
      %899 = sbr.rel (%p897) target = $region41
    $region40: #{feed_forward.1} parent=1 // pred_region
      %v900 = vld [vmem:[#allocation2] sm:$0xff]
      %v901 = vld [vmem:[#allocation2 + $0x8] sm:$0xff]
      %v902 = vadd.f32 %v900, %v884
      %v903 = vadd.f32 %v901, %v887
      %904 = vst [vmem:[#allocation2] sm:$0xff] %v902
      %905 = vst [vmem:[#allocation2 + $0x8] sm:$0xff] %v903
    $region41: #{feed_forward.1} parent=1 // pred_fallthru
      _
    // Predicated region
    $region42: #{feed_forward.1} parent=1 // pred_check
      %p906 = pneg %p890
    $region43: #{feed_forward.1} parent=1 // pred_check_branch
      %908 = sbr.rel (%p906) target = $region45
    $region44: #{feed_forward.1} parent=1 // pred_region
      %v909 = vld [vmem:[#allocation2] sm:$0xff]
      %v910 = vld [vmem:[#allocation2 + $0x8] sm:$0xff]
      %911 = vst [vmem:[#allocation11] sm:$0xff] %v909
      %912 = vst [vmem:[#allocation11 + $0x8] sm:$0xff] %v910
    $region45: #{feed_forward.1} parent=1 // pred_fallthru
      _
    // Predicated region
    $region46: #{feed_forward.1} parent=1 // pred_check
      _
    $region47: #{feed_forward.1} parent=1 // pred_check_branch
      %914 = sbr.rel (0) target = $region49
    $region48: #{feed_forward.1} parent=1 // pred_region
      %s916 = ssub.s32 256, 256
      %917 = vsyncadd [#allocation5], %s916
      %s918 = sshll.u32 [#allocation11], 4
      %s919 = int_to_ptr.vmem [resolvable:$true] %s918
      %924 = dma.vmem_to_hbm [thread:$0]  %s919, 256, %s4, [#allocation5], 128, 128, 8
    $region49: #{feed_forward.1} parent=1 // pred_fallthru
      _
    // Predicated region
    $region50: #{feed_forward.1} parent=1 // pred_check
      _
    $region51: #{feed_forward.1} parent=1 // pred_check_branch
      %926 = sbr.rel (0) target = $region53
    $region52: #{feed_forward.1} parent=1 // pred_region
      %927 = dma.done [#allocation5], 256
    $region53: #{feed_forward.1} parent=1 // pred_fallthru
      _
    %928 = vsyncpa [#allocation4], 1
    %929 = vsyncpa [#allocation7], 1
    %930 = vsyncpa [#allocation10], 1
    %931 = vsyncpa [#allocation5], 1

</llo_original>
